<compile_context>
chip_gen: v5e
topology: v5e:2x2
jax: 0.10.0
libtpu: 0.0.40
codegen_flags: <defaults>
</compile_context>

<pallas_src>
import jax
import jax.numpy as jnp
from jax.experimental import pallas as pl
from jax.experimental.pallas import tpu as pltpu

OUT_PAD = 128  # lane-dense matmul width; lives only inside VMEM, never in HBM


def _linear_clamp_kernel(x_ref, w_ref, b_ref, o_ref):
    # x_ref: (TB, IN) f32, w_ref: (IN, OUT_PAD) f32 (pre-transposed at init),
    # b_ref: (1, OUT_PAD) f32, o_ref: (TB, OUT) f32 (un-padded output block).
    y = jnp.dot(x_ref[...], w_ref[...], preferred_element_type=jnp.float32)
    y = y + b_ref[...]                              # broadcast bias
    y = jnp.minimum(jnp.maximum(y, 0.0), 30.0)      # clamp_min(0) + clamp_max(30)
    o_ref[...] = y[:, : o_ref.shape[1]].astype(o_ref.dtype)


def _round_up(v, m):
    return ((v + m - 1) // m) * m


def make_linear_clamp(weight, bias, *, block_b=1024, small_batch_threshold=64):
    """Returns forward(x): clamp(x @ weight.T + bias, 0, 30).

    weight: (OUT, IN) PyTorch nn.Linear layout, bias: (OUT,).
    One-time parameter prep (outside the per-call hot path): transpose to
    (IN, OUT) and zero-pad OUT to 128 lanes for a lane-dense in-VMEM matmul.
    """
    out_f, in_f = weight.shape
    w_p = jnp.zeros((in_f, OUT_PAD), weight.dtype).at[:, :out_f].set(weight.T)
    b_p = jnp.zeros((1, OUT_PAD), bias.dtype).at[0, :out_f].set(bias)
    w_logical = w_p[:, :out_f]
    b_logical = b_p[0, :out_f]

    def forward(x):
        b, k = x.shape
        assert k == in_f, f"expected {in_f} input features, got {k}"

        # Small-batch bypass: fixed pallas_call overhead dominates tiny GEMMs;
        # XLA fuses this into a single op and will match/beat the kernel.
        if b < small_batch_threshold:
            return jnp.clip(x @ w_logical + b_logical, 0.0, 30.0)

        # Batch tile: multiple of 8 sublanes (f32), capped at block_b, and
        # sized so the grid has >=2 steps when possible (shards across the
        # two v7x TensorCores; harmless on single-TC v5e/v6e).
        tb = min(block_b, max(8, _round_up(pl.cdiv(b, 2), 8)))
        grid = (pl.cdiv(b, tb),)   # ragged last block is masked by Pallas

        cost = pl.CostEstimate(
            flops=2 * b * in_f * OUT_PAD,
            transcendentals=0,
            bytes_accessed=4 * (b * in_f + w_p.size + b_p.size + b * out_f),
        )

        return pl.pallas_call(
            _linear_clamp_kernel,
            out_shape=jax.ShapeDtypeStruct((b, out_f), x.dtype),
            grid=grid,
            in_specs=[
                pl.BlockSpec((tb, in_f), lambda i: (i, 0)),        # x rows
                pl.BlockSpec((in_f, OUT_PAD), lambda i: (0, 0)),   # weight (resident)
                pl.BlockSpec((1, OUT_PAD), lambda i: (0, 0)),      # bias   (resident)
            ],
            out_specs=pl.BlockSpec((tb, out_f), lambda i: (i, 0)),  # un-padded out
            compiler_params=pltpu.CompilerParams(
                dimension_semantics=("parallel",),
            ),
            cost_estimate=cost,
        )(x, w_p, b_p)

    return forward


if __name__ == "__main__":
    key = jax.random.PRNGKey(0)
    kx1, kx2, kw, kb = jax.random.split(key, 4)

    IN, OUT = 10, 30
    bound = 1.0 / (IN ** 0.5)
    # nn.Linear(10, 30)-shaped params: weight (30, 10), bias (30,)
    weight = jax.random.uniform(kw, (OUT, IN), dtype=jnp.float32,
                                minval=-bound, maxval=bound)
    bias = jax.random.uniform(kb, (OUT,), dtype=jnp.float32,
                              minval=-bound, maxval=bound)

    fwd = make_linear_clamp(weight, bias)

    # 1) Small-batch path (XLA-fused bypass) — matches the original tiny test.
    x_small = jax.random.normal(kx1, (8, IN), dtype=jnp.float32)
    out_small = jax.block_until_ready(fwd(x_small))
    ref_small = jnp.clip(x_small @ weight.T + bias, 0.0, 30.0)
    assert out_small.shape == (8, OUT)
    assert jnp.allclose(out_small, ref_small, atol=1e-5, rtol=1e-5)

    # 2) Pallas path with a ragged last batch block (200 rows -> tb=104, grid=2).
    x_big = jax.random.normal(kx2, (200, IN), dtype=jnp.float32)
    out_big = jax.block_until_ready(fwd(x_big))
    ref_big = jnp.clip(x_big @ weight.T + bias, 0.0, 30.0)
    assert out_big.shape == (200, OUT)
    assert jnp.allclose(out_big, ref_big, atol=1e-5, rtol=1e-5)

    print("KERNEL_OK")
</pallas_src>

<mosaic_0001>
module attributes {stable_mosaic.version = 11 : i64} {
  func.func @_linear_clamp_kernel(%arg0: i32, %arg1: memref<104x10xf32, #tpu.memory_space<vmem>>, %arg2: memref<10x128xf32, #tpu.memory_space<vmem>>, %arg3: memref<1x128xf32, #tpu.memory_space<vmem>>, %arg4: memref<104x30xf32, #tpu.memory_space<vmem>>) attributes {dimension_semantics = [#tpu.dimension_semantics<parallel>], iteration_bounds = array<i64: 2>, scalar_prefetch = 0 : i64, scratch_operands = 0 : i64, tpu.core_type = #tpu.core_type<tc>, window_params = [{transform_indices = @transform_0, window_bounds = array<i64: 104, 10>}, {pipeline_mode = #tpu.pipeline_mode<synchronous>, transform_indices = @transform_1, window_bounds = array<i64: 10, 128>}, {pipeline_mode = #tpu.pipeline_mode<synchronous>, transform_indices = @transform_2, window_bounds = array<i64: 1, 128>}, {transform_indices = @transform_3, window_bounds = array<i64: 104, 30>}]} {
    %c0 = arith.constant 0 : index
    %c0_0 = arith.constant 0 : index
    %0 = vector.load %arg1[%c0, %c0_0] : memref<104x10xf32, #tpu.memory_space<vmem>>, vector<104x10xf32>
    %c0_1 = arith.constant 0 : index
    %c0_2 = arith.constant 0 : index
    %1 = vector.load %arg2[%c0_1, %c0_2] : memref<10x128xf32, #tpu.memory_space<vmem>>, vector<10x128xf32>
    %cst = arith.constant dense<0.000000e+00> : vector<104x128xf32>
    %2 = tpu.matmul %0, %1, %cst {dimension_numbers = #tpu.dot_dimension_numbers<[1], [0], [0], [1], [0, 0, 1, 1], [], []>} : vector<104x10xf32>, vector<10x128xf32>, vector<104x128xf32> -> vector<104x128xf32>
    %c0_3 = arith.constant 0 : index
    %c0_4 = arith.constant 0 : index
    %3 = vector.load %arg3[%c0_3, %c0_4] : memref<1x128xf32, #tpu.memory_space<vmem>>, vector<1x128xf32>
    %4 = vector.broadcast %3 : vector<1x128xf32> to vector<104x128xf32>
    %5 = arith.addf %2, %4 : vector<104x128xf32>
    %cst_5 = arith.constant 0.000000e+00 : f32
    %6 = vector.broadcast %cst_5 : f32 to vector<104x128xf32>
    %7 = arith.maximumf %5, %6 : vector<104x128xf32>
    %cst_6 = arith.constant 3.000000e+01 : f32
    %8 = vector.broadcast %cst_6 : f32 to vector<104x128xf32>
    %9 = arith.minimumf %7, %8 : vector<104x128xf32>
    %10 = vector.extract_strided_slice %9 {offsets = [0, 0], sizes = [104, 30], strides = [1, 1]} : vector<104x128xf32> to vector<104x30xf32>
    %c0_7 = arith.constant 0 : index
    %c0_8 = arith.constant 0 : index
    %11 = vector.load %arg4[%c0_7, %c0_8] : memref<104x30xf32, #tpu.memory_space<vmem>>, vector<104x30xf32>
    tpu.vector_store %arg4[%c0_7, %c0_8], %10 {strides = array<i32>} : memref<104x30xf32, #tpu.memory_space<vmem>>, vector<104x30xf32>,
    return
  }
  func.func @transform_0(%arg0: i32) -> (i32, i32) {
    %c0_i32 = arith.constant 0 : i32
    %c0_i32_0 = arith.constant 0 : i32
    return %arg0, %c0_i32 : i32, i32
  }
  func.func @transform_1(%arg0: i32) -> (i32, i32) {
    %c0_i32 = arith.constant 0 : i32
    %c0_i32_0 = arith.constant 0 : i32
    %c0_i32_1 = arith.constant 0 : i32
    return %c0_i32, %c0_i32_0 : i32, i32
  }
  func.func @transform_2(%arg0: i32) -> (i32, i32) {
    %c0_i32 = arith.constant 0 : i32
    %c0_i32_0 = arith.constant 0 : i32
    %c0_i32_1 = arith.constant 0 : i32
    return %c0_i32, %c0_i32_0 : i32, i32
  }
  func.func @transform_3(%arg0: i32) -> (i32, i32) {
    %c0_i32 = arith.constant 0 : i32
    %c0_i32_0 = arith.constant 0 : i32
    return %arg0, %c0_i32 : i32, i32
  }
}

</mosaic_0001>

<llo_original>
// kernel: tpu_custom_call.1
$region0: #{tpu_custom_call.1}
  #allocation0 [shape = 'u32[]', space=smem, size = 0x4, offset = 0x4, fixed_abs, tag = 'smem constant byte address 0x4 - core index']
  #allocation1 [shape = 'u32[72,128]{1,0:T(1,128)}', space=vmem, size = 0x9000, scoped, tag = 'internal scratch']
  %s0 = inlined_call_operand.vmem [shape: f32[200,10], index: 0, kind: input, shape index: {}]
  %s1 = inlined_call_operand.vmem [shape: f32[10,128], index: 1, kind: input, shape index: {}]
  %s2 = inlined_call_operand.vmem [shape: f32[1,128], index: 2, kind: input, shape index: {}]
  %s3 = inlined_call_operand.vmem [shape: f32[200,30], index: 3, kind: output, shape index: {}]
  %s4 = sld [smem:[#allocation0]]
  $region93: #{tpu_custom_call.1} parent=0
    _
  %s6 = ssub.s32 1, %s4
  %s7 = scalar_select 0, %s6, %s4
  $region1: #{tpu_custom_call.1} parent=0
    #allocation2 [shape = 'u8[106496]{0}', space=vmem, size = 0x1a000, scoped, tag = 'output window, operand 0']
    loop: start=0, step=1, limit=4
    $region2: #{tpu_custom_call.1} parent=1 // loop_pre_header
      _
    $region3: #{tpu_custom_call.1} parent=1 // loop_header
      %s9 = sphi 0, %s13
      %p10 = scmp.ge.s32.totalorder %s9, 4
      %s19 = sphi 0, %s21
      %s22 = sphi 0, %s19
      %s23 = sphi 0, %s22
      %s39 = sphi 0, %s23
      %s43 = sphi 0, %s43
      %s45 = sphi 0, %s43
      %s46 = sphi 0, %s45
      %s60 = sphi 0, %s46
      %s64 = sphi 0, %s64
      %s66 = sphi 0, %s64
      %s67 = sphi 0, %s66
      %s81 = sphi 0, %s67
      %s87 = sphi 0, %s89
      %s90 = sphi 0, %s87
      %s91 = sphi 0, %s90
      %s107 = sphi 0, %s91
    $region4: #{tpu_custom_call.1} parent=1 // loop_header_branch
      %12 = sbr.rel (%p10) target = $region8
    $region5: #{tpu_custom_call.1} parent=1 // loop_body
      %s14 = ssub.s32 %s9, 1
      %s15 = ssub.s32 %s9, 2
      %s16 = sadd.s32 %s9, 1
      %s17 = ssub.s32 %s9, %s16
      %p18 = scmp.eq.s32.totalorder %s17, 0
      %s20 = sadd.s32 %s19, 1
      %s21 = scalar_select %p18, %s19, %s20
      %p24 = pneg %p18
      %p25 = scmp.eq.s32.totalorder %s9, 1
      %p26 = por %p24, %p25
      %p27 = scmp.ne.s32.totalorder %s19, %s22
      %p28 = scmp.eq.s32.totalorder %s9, 0
      %p29 = por %p27, %p28
      %p30 = scmp.ne.s32.totalorder %s19, %s22
      %p31 = scmp.eq.s32.totalorder %s14, 1
      %p32 = por %p30, %p31
      %p33 = scmp.ne.s32.totalorder %s22, %s23
      %p34 = scmp.eq.s32.totalorder %s14, 0
      %p35 = por %p33, %p34
      %p36 = scmp.ne.s32.totalorder %s22, %s23
      %p37 = scmp.eq.s32.totalorder %s15, 1
      %p38 = por %p36, %p37
      %p40 = scmp.ne.s32.totalorder %s23, %s39
      %p41 = scmp.eq.s32.totalorder %s15, 0
      %p42 = por %p40, %p41
      %s44 = sadd.s32 %s43, 1
      %p47 = scmp.eq.s32.totalorder %s9, 1
      %p48 = scmp.ne.s32.totalorder %s43, %s45
      %p49 = scmp.eq.s32.totalorder %s9, 0
      %p50 = por %p48, %p49
      %p51 = scmp.ne.s32.totalorder %s43, %s45
      %p52 = scmp.eq.s32.totalorder %s14, 1
      %p53 = por %p51, %p52
      %p54 = scmp.ne.s32.totalorder %s45, %s46
      %p55 = scmp.eq.s32.totalorder %s14, 0
      %p56 = por %p54, %p55
      %p57 = scmp.ne.s32.totalorder %s45, %s46
      %p58 = scmp.eq.s32.totalorder %s15, 1
      %p59 = por %p57, %p58
      %p61 = scmp.ne.s32.totalorder %s46, %s60
      %p62 = scmp.eq.s32.totalorder %s15, 0
      %p63 = por %p61, %p62
      %s65 = sadd.s32 %s64, 1
      %p68 = scmp.eq.s32.totalorder %s9, 1
      %p69 = scmp.ne.s32.totalorder %s64, %s66
      %p70 = scmp.eq.s32.totalorder %s9, 0
      %p71 = por %p69, %p70
      %p72 = scmp.ne.s32.totalorder %s64, %s66
      %p73 = scmp.eq.s32.totalorder %s14, 1
      %p74 = por %p72, %p73
      %p75 = scmp.ne.s32.totalorder %s66, %s67
      %p76 = scmp.eq.s32.totalorder %s14, 0
      %p77 = por %p75, %p76
      %p78 = scmp.ne.s32.totalorder %s66, %s67
      %p79 = scmp.eq.s32.totalorder %s15, 1
      %p80 = por %p78, %p79
      %p82 = scmp.ne.s32.totalorder %s67, %s81
      %p83 = scmp.eq.s32.totalorder %s15, 0
      %p84 = por %p82, %p83
      %s85 = ssub.s32 %s9, %s16
      %p86 = scmp.eq.s32.totalorder %s85, 0
      %s88 = sadd.s32 %s87, 1
      %s89 = scalar_select %p86, %s87, %s88
      %p92 = pneg %p86
      %p93 = scmp.eq.s32.totalorder %s9, 1
      %p94 = por %p92, %p93
      %p95 = scmp.ne.s32.totalorder %s87, %s90
      %p96 = scmp.eq.s32.totalorder %s9, 0
      %p97 = por %p95, %p96
      %p98 = scmp.ne.s32.totalorder %s87, %s90
      %p99 = scmp.eq.s32.totalorder %s14, 1
      %p100 = por %p98, %p99
      %p101 = scmp.ne.s32.totalorder %s90, %s91
      %p102 = scmp.eq.s32.totalorder %s14, 0
      %p103 = por %p101, %p102
      %p104 = scmp.ne.s32.totalorder %s90, %s91
      %p105 = scmp.eq.s32.totalorder %s15, 1
      %p106 = por %p104, %p105
      %p108 = scmp.ne.s32.totalorder %s91, %s107
      %p109 = scmp.eq.s32.totalorder %s15, 0
      %p110 = por %p108, %p109
      %p111 = scmp.le.s32.totalorder 1, %s9
      %p112 = scmp.lt.s32.totalorder %s9, 3
      %p113 = pnand %p111, %p112
      %p114 = pneg %p113
      // Predicated region
      $region9: #{tpu_custom_call.1} parent=5 // pred_check
        _
      $region10: #{tpu_custom_call.1} parent=5 // pred_check_branch
        %116 = sbr.rel (%p113) target = $region12
      $region11: #{tpu_custom_call.1} parent=5 // pred_region
        %s117 = ssub.s32 %s9, 1
        // Predicated region
        $region13: #{tpu_custom_call.1} parent=11 // pred_check
          %p118 = pneg %p56
        $region14: #{tpu_custom_call.1} parent=11 // pred_check_branch
          %120 = sbr.rel (%p118) target = $region16
        $region15: #{tpu_custom_call.1} parent=11 // pred_region
          _
        $region16: #{tpu_custom_call.1} parent=11 // pred_fallthru
          _
        // Predicated region
        $region17: #{tpu_custom_call.1} parent=11 // pred_check
          %p121 = pneg %p77
        $region18: #{tpu_custom_call.1} parent=11 // pred_check_branch
          %123 = sbr.rel (%p121) target = $region20
        $region19: #{tpu_custom_call.1} parent=11 // pred_region
          _
        $region20: #{tpu_custom_call.1} parent=11 // pred_fallthru
          _
      $region12: #{tpu_custom_call.1} parent=5 // pred_fallthru
        _
      %p124 = scmp.lt.s32.totalorder %s9, 2
      // Predicated region
      $region21: #{tpu_custom_call.1} parent=5 // pred_check
        %p125 = pneg %p124
      $region22: #{tpu_custom_call.1} parent=5 // pred_check_branch
        %127 = sbr.rel (%p125) target = $region24
      $region23: #{tpu_custom_call.1} parent=5 // pred_region
        // Predicated region
        $region25: #{tpu_custom_call.1} parent=23 // pred_check
          %p128 = pneg %p29
        $region26: #{tpu_custom_call.1} parent=23 // pred_check_branch
          %130 = sbr.rel (%p128) target = $region28
        $region27: #{tpu_custom_call.1} parent=23 // pred_region
          %s131 = smul.u32 13, %s9
          %s132 = ssub.s32 25, %s131
          %p133 = scmp.lt.s32.totalorder %s132, 13
          %s134 = scalar_select %p133, %s132, 13
          %s135 = smul.u32 8, %s134
          %p136 = scmp.lt.s32.totalorder %s131, 24
          %s137 = scalar_select %p136, %s131, 24
          %s138 = smul.addr %s137, 8
          %s139 = scalar_lea.vmem %s0, %s138
          %s140 = smul.u32 13, %s9
          %s141 = ssub.s32 25, %s140
          %p142 = scmp.lt.s32.totalorder %s141, 13
          %s143 = scalar_select %p142, %s141, 13
          %s144 = smul.u32 8, %s143
        $region28: #{tpu_custom_call.1} parent=23 // pred_fallthru
          _
      $region24: #{tpu_custom_call.1} parent=5 // pred_fallthru
        _
      %p145 = scmp.le.s32.totalorder 1, %s9
      %p146 = scmp.lt.s32.totalorder %s9, 3
      %p147 = pnand %p145, %p146
      %p148 = pneg %p147
      // Predicated region
      $region29: #{tpu_custom_call.1} parent=5 // pred_check
        _
      $region30: #{tpu_custom_call.1} parent=5 // pred_check_branch
        %150 = sbr.rel (%p147) target = $region32
      $region31: #{tpu_custom_call.1} parent=5 // pred_region
        %s151 = ssub.s32 %s9, 1
        %s152 = smul.u32 13, %s14
        %s153 = ssub.s32 25, %s152
        %p154 = scmp.lt.s32.totalorder %s153, 13
        %s155 = scalar_select %p154, %s153, 13
        %s156 = smul.u32 8, %s155
        %p157 = scmp.lt.s32.totalorder %s152, 24
        %s158 = scalar_select %p157, %s152, 24
        %s159 = smul.addr %s158, 8
        %s160 = scalar_lea.vmem %s0, %s159
        %p161 = pneg %p35
        %p162 = pneg %p32
        %p163 = pneg %p56
        %p164 = pneg %p53
        %p165 = pneg %p77
        %p166 = pneg %p74
        %p167 = pneg %p103
        %p168 = pneg %p100
        %s169 = sand.u32 %s90, 1
        %s170 = sand.u32 %s90, 1
        %s171 = smul.addr %s170, 104
        %s172 = scalar_lea.vmem [#allocation2], %s171
        %s173 = smul.u32 13, %s14
        %s174 = ssub.s32 25, %s173
        %p175 = scmp.lt.s32.totalorder %s174, 13
        %s176 = scalar_select %p175, %s174, 13
        %s177 = smul.u32 8, %s176
        %p178 = scmp.lt.s32.totalorder %s173, 24
        %s179 = scalar_select %p178, %s173, 24
        %s180 = smul.addr %s179, 8
        %s181 = scalar_lea.vmem %s0, %s180
        %s182 = smul.u32 13, %s14
        %s183 = ssub.s32 25, %s182
        %p184 = scmp.lt.s32.totalorder %s183, 13
        %s185 = scalar_select %p184, %s183, 13
        %s186 = smul.u32 8, %s185
        %s187 = smul.u32 13, %s14
        %s188 = ssub.s32 25, %s187
        %p189 = scmp.lt.s32.totalorder %s188, 13
        %s190 = scalar_select %p189, %s188, 13
        %s191 = smul.u32 8, %s190
        %v192 = vld [vmem:[%s181] sm:$0xff]
        %v193 = vld [vmem:[%s181 + $0x8] sm:$0xff]
        %v194 = vld [vmem:[%s181 + $0x10] sm:$0xff]
        %v195 = vld [vmem:[%s181 + $0x18] sm:$0xff]
        %v196 = vld [vmem:[%s181 + $0x20] sm:$0xff]
        %v197 = vld [vmem:[%s181 + $0x28] sm:$0xff]
        %v198 = vld [vmem:[%s181 + $0x30] sm:$0xff]
        %v199 = vld [vmem:[%s181 + $0x38] sm:$0xff]
        %v200 = vld [vmem:[%s181 + $0x40] sm:$0xff]
        %v201 = vld [vmem:[%s181 + $0x48] sm:$0xff]
        %v202 = vld [vmem:[%s181 + $0x50] sm:$0xff]
        %v203 = vld [vmem:[%s181 + $0x58] sm:$0xff]
        %v204 = vld [vmem:[%s181 + $0x60] sm:$0xff]
        %v205 = vld [vmem:[%s1] sm:$0xff]
        %v206 = vld [vmem:[%s1 + $0x8] sm:$0x3]
        %v207 = vld [vmem:[%s2] sm:$0x1]
        %v209 = vperm.slane %v207, 0
        %vm211 = vcmask 80896
        %v213 = vsel %vm211, %v192, 0
        %v216 = vsel %vm211, %v193, 0
        %v219 = vsel %vm211, %v194, 0
        %v222 = vsel %vm211, %v195, 0
        %v225 = vsel %vm211, %v196, 0
        %v228 = vsel %vm211, %v197, 0
        %v231 = vsel %vm211, %v198, 0
        %v234 = vsel %vm211, %v199, 0
        %v237 = vsel %vm211, %v200, 0
        %v240 = vsel %vm211, %v201, 0
        %v243 = vsel %vm211, %v202, 0
        %v246 = vsel %vm211, %v203, 0
        %v249 = vsel %vm211, %v204, 0
        %vm251 = vcmask 1041408
        %v253 = vsel %vm251, %v206, 0
        %255 = vmatpush.msra.mxu0 0.0
        %256 = vmatpush.msra.mxu0 0.0
        %257 = vmatpush.msra.mxu0 0.0
        %258 = vmatpush.msra.mxu0 0.0
        %259 = vmatpush.msra.mxu0 0.0
        %260 = vmatpush.msra.mxu0 0.0
        %261 = vmatpush.msra.mxu0 0.0
        %262 = vmatpush.msra.mxu0 0.0
        %263 = vmatpush.msra.mxu0 0.0
        %264 = vmatpush.msra.mxu0 0.0
        %265 = vmatpush.msra.mxu0 0.0
        %266 = vmatpush.msra.mxu0 0.0
        %267 = vmatpush.msra.mxu0 0.0
        %268 = vmatpush.msra.mxu0 0.0
        %269 = vmatpush.msra.mxu0 %v253
        %270 = vmatpush.msra.mxu0 %v205
        %271 = vmatmul.f32.gmra.mxu0 %v213
        %v272 = vpop.f32.mrf.mxu0
        %v273 = vadd.f32 %v209, %v272
        %274 = vmatmul.f32.gmra.mxu0 %v216
        %v275 = vpop.f32.mrf.mxu0
        %v276 = vadd.f32 %v209, %v275
        %277 = vmatmul.f32.gmra.mxu0 %v219
        %v278 = vpop.f32.mrf.mxu0
        %v279 = vadd.f32 %v209, %v278
        %280 = vmatmul.f32.gmra.mxu0 %v222
        %v281 = vpop.f32.mrf.mxu0
        %v282 = vadd.f32 %v209, %v281
        %283 = vmatmul.f32.gmra.mxu0 %v225
        %v284 = vpop.f32.mrf.mxu0
        %v285 = vadd.f32 %v209, %v284
        %286 = vmatmul.f32.gmra.mxu0 %v228
        %v287 = vpop.f32.mrf.mxu0
        %v288 = vadd.f32 %v209, %v287
        %289 = vmatmul.f32.gmra.mxu0 %v231
        %v290 = vpop.f32.mrf.mxu0
        %v291 = vadd.f32 %v209, %v290
        %292 = vmatmul.f32.gmra.mxu0 %v234
        %v293 = vpop.f32.mrf.mxu0
        %v294 = vadd.f32 %v209, %v293
        %295 = vmatmul.f32.gmra.mxu0 %v237
        %v296 = vpop.f32.mrf.mxu0
        %v297 = vadd.f32 %v209, %v296
        %298 = vmatmul.f32.gmra.mxu0 %v240
        %v299 = vpop.f32.mrf.mxu0
        %v300 = vadd.f32 %v209, %v299
        %301 = vmatmul.f32.gmra.mxu0 %v243
        %v302 = vpop.f32.mrf.mxu0
        %v303 = vadd.f32 %v209, %v302
        %304 = vmatmul.f32.gmra.mxu0 %v246
        %v305 = vpop.f32.mrf.mxu0
        %v306 = vadd.f32 %v209, %v305
        %307 = vmatmul.f32.gmra.mxu0 %v249
        %v308 = vpop.f32.mrf.mxu0
        %v309 = vadd.f32 %v209, %v308
        %310 = vdwg.mxu0
        %v311 = vmax.f32 %v273, 0.0
        %v312 = vmax.f32 %v276, 0.0
        %v313 = vmax.f32 %v279, 0.0
        %v314 = vmax.f32 %v282, 0.0
        %v315 = vmax.f32 %v285, 0.0
        %v316 = vmax.f32 %v288, 0.0
        %v317 = vmax.f32 %v291, 0.0
        %v318 = vmax.f32 %v294, 0.0
        %v319 = vmax.f32 %v297, 0.0
        %v320 = vmax.f32 %v300, 0.0
        %v321 = vmax.f32 %v303, 0.0
        %v322 = vmax.f32 %v306, 0.0
        %v323 = vmax.f32 %v309, 0.0
        %v324 = vmin.f32 %v311, 30.0
        %v325 = vmin.f32 %v312, 30.0
        %v326 = vmin.f32 %v313, 30.0
        %v327 = vmin.f32 %v314, 30.0
        %v328 = vmin.f32 %v315, 30.0
        %v329 = vmin.f32 %v316, 30.0
        %v330 = vmin.f32 %v317, 30.0
        %v331 = vmin.f32 %v318, 30.0
        %v332 = vmin.f32 %v319, 30.0
        %v333 = vmin.f32 %v320, 30.0
        %v334 = vmin.f32 %v321, 30.0
        %v335 = vmin.f32 %v322, 30.0
        %v336 = vmin.f32 %v323, 30.0
        %vm337 = vcmask 244736
        %338 = vst.msk [vmem:[%s172] sm:$0xff] %vm337, %v324
        %339 = vst.msk [vmem:[%s172 + $0x8] sm:$0xff] %vm337, %v325
        %340 = vst.msk [vmem:[%s172 + $0x10] sm:$0xff] %vm337, %v326
        %341 = vst.msk [vmem:[%s172 + $0x18] sm:$0xff] %vm337, %v327
        %342 = vst.msk [vmem:[%s172 + $0x20] sm:$0xff] %vm337, %v328
        %343 = vst.msk [vmem:[%s172 + $0x28] sm:$0xff] %vm337, %v329
        %344 = vst.msk [vmem:[%s172 + $0x30] sm:$0xff] %vm337, %v330
        %345 = vst.msk [vmem:[%s172 + $0x38] sm:$0xff] %vm337, %v331
        %346 = vst.msk [vmem:[%s172 + $0x40] sm:$0xff] %vm337, %v332
        %347 = vst.msk [vmem:[%s172 + $0x48] sm:$0xff] %vm337, %v333
        %348 = vst.msk [vmem:[%s172 + $0x50] sm:$0xff] %vm337, %v334
        %349 = vst.msk [vmem:[%s172 + $0x58] sm:$0xff] %vm337, %v335
        %350 = vst.msk [vmem:[%s172 + $0x60] sm:$0xff] %vm337, %v336
        %s351 = sand.u32 %s90, 1
        %s352 = sand.u32 %s90, 1
        %s353 = smul.addr %s352, 104
        %s354 = scalar_lea.vmem [#allocation2], %s353
        // Predicated region
        $region33: #{tpu_custom_call.1} parent=31 // pred_check
          %p355 = pneg %p100
        $region34: #{tpu_custom_call.1} parent=31 // pred_check_branch
          %357 = sbr.rel (%p355) target = $region36
        $region35: #{tpu_custom_call.1} parent=31 // pred_region
          %s358 = smul.u32 13, %s14
          %s359 = ssub.s32 25, %s358
          %p360 = scmp.lt.s32.totalorder %s359, 13
          %s361 = scalar_select %p360, %s359, 13
          %s362 = smul.u32 8, %s361
          %p363 = scmp.ne.s32.totalorder 0, %s362
          %s364 = smul.addr %s358, 8
          %s365 = scalar_lea.vmem %s3, %s364
          // Predicated region
          $region37: #{tpu_custom_call.1} parent=35 // pred_check
            %p366 = pneg %p363
          $region38: #{tpu_custom_call.1} parent=35 // pred_check_branch
            %368 = sbr.rel (%p366) target = $region40
          $region39: #{tpu_custom_call.1} parent=35 // pred_region
            // Predicated region
            $region41: #{tpu_custom_call.1} parent=39 // pred_check
              _
            $region42: #{tpu_custom_call.1} parent=39 // pred_check_branch
              %370 = sbr.rel (0) target = $region44
            $region43: #{tpu_custom_call.1} parent=39 // pred_region
              // Predicated region
              $region63: #{tpu_custom_call.1} parent=43 // pred_check
                _
              $region64: #{tpu_custom_call.1} parent=43 // pred_check_branch
                %445 = sbr.rel (0) target = $region66
              $region65: #{tpu_custom_call.1} parent=43 // pred_region
                %s446 = sdiv.u32.pop %s361, 13
                %s447 = srem.u32.pop %s361, 13
                // While loop
                $region67: #{tpu_custom_call.1} parent=65 // loop_pre_header
                  _
                $region68: #{tpu_custom_call.1} parent=65 // loop_header
                  %s449 = sphi 0, %s451
                  %p450 = scmp.ge.s32.totalorder %s449, %s446
                  %s454 = sphi 0, %s485
                  %s455 = sphi %s354, %s488
                  %s456 = sphi %s365, %s489
                $region69: #{tpu_custom_call.1} parent=65 // loop_header_branch
                  %453 = sbr.rel (%p450) target = $region73
                $region70: #{tpu_custom_call.1} parent=65 // loop_body
                  %v457 = vld [vmem:[%s455] sm:$0xff]
                  %458 = vst [vmem:[%s456] sm:$0xff] %v457
                  %v459 = vld [vmem:[%s455 + $0x8] sm:$0xff]
                  %460 = vst [vmem:[%s456 + $0x8] sm:$0xff] %v459
                  %v461 = vld [vmem:[%s455 + $0x10] sm:$0xff]
                  %462 = vst [vmem:[%s456 + $0x10] sm:$0xff] %v461
                  %v463 = vld [vmem:[%s455 + $0x18] sm:$0xff]
                  %464 = vst [vmem:[%s456 + $0x18] sm:$0xff] %v463
                  %v465 = vld [vmem:[%s455 + $0x20] sm:$0xff]
                  %466 = vst [vmem:[%s456 + $0x20] sm:$0xff] %v465
                  %v467 = vld [vmem:[%s455 + $0x28] sm:$0xff]
                  %468 = vst [vmem:[%s456 + $0x28] sm:$0xff] %v467
                  %v469 = vld [vmem:[%s455 + $0x30] sm:$0xff]
                  %470 = vst [vmem:[%s456 + $0x30] sm:$0xff] %v469
                  %v471 = vld [vmem:[%s455 + $0x38] sm:$0xff]
                  %472 = vst [vmem:[%s456 + $0x38] sm:$0xff] %v471
                  %v473 = vld [vmem:[%s455 + $0x40] sm:$0xff]
                  %474 = vst [vmem:[%s456 + $0x40] sm:$0xff] %v473
                  %v475 = vld [vmem:[%s455 + $0x48] sm:$0xff]
                  %476 = vst [vmem:[%s456 + $0x48] sm:$0xff] %v475
                  %v477 = vld [vmem:[%s455 + $0x50] sm:$0xff]
                  %478 = vst [vmem:[%s456 + $0x50] sm:$0xff] %v477
                  %v479 = vld [vmem:[%s455 + $0x58] sm:$0xff]
                  %480 = vst [vmem:[%s456 + $0x58] sm:$0xff] %v479
                  %v481 = vld [vmem:[%s455 + $0x60] sm:$0xff]
                  %482 = vst [vmem:[%s456 + $0x60] sm:$0xff] %v481
                  %s483 = sadd.s32 1, %s454
                  %p484 = scmp.ge.s32.totalorder %s483, %s446
                  %s485 = scalar_select %p484, 0, %s483
                  %s486 = smul.u32 %s485, 104
                  %s487 = smul.u32 %s485, 104
                  %s488 = scalar_lea.vmem %s354, %s486 [#allocation2]
                  %s489 = scalar_lea.vmem %s365, %s487
                $region71: #{tpu_custom_call.1} parent=65 // loop_footer
                  %s451 = sadd.s32 %s449, 1
                $region72: #{tpu_custom_call.1} parent=65 // loop_footer_branch
                  %448 = sbr.rel target = $region68
                $region73: #{tpu_custom_call.1} parent=65 // loop_exit
                  _
                %s490 = sdiv.u32.pop %s361, 13
                %s491 = srem.u32.pop %s361, 13
                %s492 = smul.u32 %s490, 13
                %s493 = smul.u32 8, %s492
                %s494 = scalar_lea.vmem %s354, %s493 [#allocation2]
                %s495 = smul.u32 8, %s492
                %s496 = scalar_lea.vmem %s365, %s495
                // While loop
                $region74: #{tpu_custom_call.1} parent=65 // loop_pre_header
                  _
                $region75: #{tpu_custom_call.1} parent=65 // loop_header
                  %s498 = sphi 0, %s500
                  %p499 = scmp.ge.s32.totalorder %s498, %s491
                  %s503 = sphi 0, %s510
                  %s504 = sphi %s494, %s513
                  %s505 = sphi %s496, %s514
                $region76: #{tpu_custom_call.1} parent=65 // loop_header_branch
                  %502 = sbr.rel (%p499) target = $region80
                $region77: #{tpu_custom_call.1} parent=65 // loop_body
                  %v506 = vld [vmem:[%s504] sm:$0xff]
                  %507 = vst [vmem:[%s505] sm:$0xff] %v506
                  %s508 = sadd.s32 1, %s503
                  %p509 = scmp.ge.s32.totalorder %s508, %s491
                  %s510 = scalar_select %p509, 0, %s508
                  %s511 = smul.u32 %s510, 8
                  %s512 = smul.u32 %s510, 8
                  %s513 = scalar_lea.vmem %s494, %s511 [#allocation2]
                  %s514 = scalar_lea.vmem %s496, %s512
                $region78: #{tpu_custom_call.1} parent=65 // loop_footer
                  %s500 = sadd.s32 %s498, 1
                $region79: #{tpu_custom_call.1} parent=65 // loop_footer_branch
                  %497 = sbr.rel target = $region75
                $region80: #{tpu_custom_call.1} parent=65 // loop_exit
                  _
              $region66: #{tpu_custom_call.1} parent=43 // pred_fallthru
                _
              // Predicated region
              $region81: #{tpu_custom_call.1} parent=43 // pred_check
                _
              $region82: #{tpu_custom_call.1} parent=43 // pred_check_branch
                %516 = sbr.rel target = $region84
              $region83: #{tpu_custom_call.1} parent=43 // pred_region
                _
              $region84: #{tpu_custom_call.1} parent=43 // pred_fallthru
                _
            $region44: #{tpu_custom_call.1} parent=39 // pred_fallthru
              _
            // Predicated region
            $region45: #{tpu_custom_call.1} parent=39 // pred_check
              _
            $region46: #{tpu_custom_call.1} parent=39 // pred_check_branch
              %372 = sbr.rel target = $region48
            $region47: #{tpu_custom_call.1} parent=39 // pred_region
              %s374 = ssub.s32 256, 1
              %s375 = sdiv.u32.pop %s361, 13
              %s376 = srem.u32.pop %s361, 13
              // While loop
              $region49: #{tpu_custom_call.1} parent=47 // loop_pre_header
                _
              $region50: #{tpu_custom_call.1} parent=47 // loop_header
                %s378 = sphi 0, %s380
                %p379 = scmp.ge.s32.totalorder %s378, %s375
                %s383 = sphi 0, %s414
                %s384 = sphi %s354, %s417
                %s385 = sphi %s365, %s418
              $region51: #{tpu_custom_call.1} parent=47 // loop_header_branch
                %382 = sbr.rel (%p379) target = $region55
              $region52: #{tpu_custom_call.1} parent=47 // loop_body
                %v386 = vld [vmem:[%s384] sm:%s374]
                %387 = vst [vmem:[%s385] sm:%s374] %v386
                %v388 = vld [vmem:[%s384 + $0x8] sm:%s374]
                %389 = vst [vmem:[%s385 + $0x8] sm:%s374] %v388
                %v390 = vld [vmem:[%s384 + $0x10] sm:%s374]
                %391 = vst [vmem:[%s385 + $0x10] sm:%s374] %v390
                %v392 = vld [vmem:[%s384 + $0x18] sm:%s374]
                %393 = vst [vmem:[%s385 + $0x18] sm:%s374] %v392
                %v394 = vld [vmem:[%s384 + $0x20] sm:%s374]
                %395 = vst [vmem:[%s385 + $0x20] sm:%s374] %v394
                %v396 = vld [vmem:[%s384 + $0x28] sm:%s374]
                %397 = vst [vmem:[%s385 + $0x28] sm:%s374] %v396
                %v398 = vld [vmem:[%s384 + $0x30] sm:%s374]
                %399 = vst [vmem:[%s385 + $0x30] sm:%s374] %v398
                %v400 = vld [vmem:[%s384 + $0x38] sm:%s374]
                %401 = vst [vmem:[%s385 + $0x38] sm:%s374] %v400
                %v402 = vld [vmem:[%s384 + $0x40] sm:%s374]
                %403 = vst [vmem:[%s385 + $0x40] sm:%s374] %v402
                %v404 = vld [vmem:[%s384 + $0x48] sm:%s374]
                %405 = vst [vmem:[%s385 + $0x48] sm:%s374] %v404
                %v406 = vld [vmem:[%s384 + $0x50] sm:%s374]
                %407 = vst [vmem:[%s385 + $0x50] sm:%s374] %v406
                %v408 = vld [vmem:[%s384 + $0x58] sm:%s374]
                %409 = vst [vmem:[%s385 + $0x58] sm:%s374] %v408
                %v410 = vld [vmem:[%s384 + $0x60] sm:%s374]
                %411 = vst [vmem:[%s385 + $0x60] sm:%s374] %v410
                %s412 = sadd.s32 1, %s383
                %p413 = scmp.ge.s32.totalorder %s412, %s375
                %s414 = scalar_select %p413, 0, %s412
                %s415 = smul.u32 %s414, 104
                %s416 = smul.u32 %s414, 104
                %s417 = scalar_lea.vmem %s354, %s415 [#allocation2]
                %s418 = scalar_lea.vmem %s365, %s416
              $region53: #{tpu_custom_call.1} parent=47 // loop_footer
                %s380 = sadd.s32 %s378, 1
              $region54: #{tpu_custom_call.1} parent=47 // loop_footer_branch
                %377 = sbr.rel target = $region50
              $region55: #{tpu_custom_call.1} parent=47 // loop_exit
                _
              %s419 = sdiv.u32.pop %s361, 13
              %s420 = srem.u32.pop %s361, 13
              %s421 = smul.u32 %s419, 13
              %s422 = smul.u32 8, %s421
              %s423 = scalar_lea.vmem %s354, %s422 [#allocation2]
              %s424 = smul.u32 8, %s421
              %s425 = scalar_lea.vmem %s365, %s424
              // While loop
              $region56: #{tpu_custom_call.1} parent=47 // loop_pre_header
                _
              $region57: #{tpu_custom_call.1} parent=47 // loop_header
                %s427 = sphi 0, %s429
                %p428 = scmp.ge.s32.totalorder %s427, %s420
                %s432 = sphi 0, %s439
                %s433 = sphi %s423, %s442
                %s434 = sphi %s425, %s443
              $region58: #{tpu_custom_call.1} parent=47 // loop_header_branch
                %431 = sbr.rel (%p428) target = $region62
              $region59: #{tpu_custom_call.1} parent=47 // loop_body
                %v435 = vld [vmem:[%s433] sm:%s374]
                %436 = vst [vmem:[%s434] sm:%s374] %v435
                %s437 = sadd.s32 1, %s432
                %p438 = scmp.ge.s32.totalorder %s437, %s420
                %s439 = scalar_select %p438, 0, %s437
                %s440 = smul.u32 %s439, 8
                %s441 = smul.u32 %s439, 8
                %s442 = scalar_lea.vmem %s423, %s440 [#allocation2]
                %s443 = scalar_lea.vmem %s425, %s441
              $region60: #{tpu_custom_call.1} parent=47 // loop_footer
                %s429 = sadd.s32 %s427, 1
              $region61: #{tpu_custom_call.1} parent=47 // loop_footer_branch
                %426 = sbr.rel target = $region57
              $region62: #{tpu_custom_call.1} parent=47 // loop_exit
                _
            $region48: #{tpu_custom_call.1} parent=39 // pred_fallthru
              _
          $region40: #{tpu_custom_call.1} parent=35 // pred_fallthru
            _
          %517 = vnop
        $region36: #{tpu_custom_call.1} parent=31 // pred_fallthru
          _
      $region32: #{tpu_custom_call.1} parent=5 // pred_fallthru
        _
      %p518 = scmp.le.s32.totalorder 2, %s9
      // Predicated region
      $region85: #{tpu_custom_call.1} parent=5 // pred_check
        %p519 = pneg %p518
      $region86: #{tpu_custom_call.1} parent=5 // pred_check_branch
        %521 = sbr.rel (%p519) target = $region88
      $region87: #{tpu_custom_call.1} parent=5 // pred_region
        %s522 = ssub.s32 %s9, 2
        // Predicated region
        $region89: #{tpu_custom_call.1} parent=87 // pred_check
          %p523 = pneg %p106
        $region90: #{tpu_custom_call.1} parent=87 // pred_check_branch
          %525 = sbr.rel (%p523) target = $region92
        $region91: #{tpu_custom_call.1} parent=87 // pred_region
          %s526 = sand.u32 %s91, 1
          %s527 = sand.u32 %s91, 1
          %s528 = smul.addr %s527, 104
          %s529 = scalar_lea.vmem [#allocation2], %s528
        $region92: #{tpu_custom_call.1} parent=87 // pred_fallthru
          _
      $region88: #{tpu_custom_call.1} parent=5 // pred_fallthru
        _
    $region6: #{tpu_custom_call.1} parent=1 // loop_footer
      %s13 = sadd.s32 1, %s9
    $region7: #{tpu_custom_call.1} parent=1 // loop_footer_branch
      %8 = sbr.rel target = $region3
    $region8: #{tpu_custom_call.1} parent=1 // loop_exit
      _

</llo_original>
